<compile_context>
chip_gen: v5e
topology: v5e:2x2
jax: 0.10.0
libtpu: 0.0.40
codegen_flags: <defaults>
</compile_context>

<pallas_src>
import functools

import jax
import jax.numpy as jnp
from jax.experimental import pallas as pl
from jax.experimental.pallas import tpu as pltpu


def _vae_kernel(
    x_ref, eps_ref,
    we0_ref, be0_ref,          # encoder L0:            (D_in, H), (1, H)
    wmv_ref, bmv_ref,          # fused means|log_var:   (H, 2Z),  (1, 2Z)
    wd0_ref, bd0_ref,          # decoder L0:            (Z, H),   (1, H)
    wd1_ref, bd1_ref,          # decoder L1 (final):    (H, D_out), (1, D_out)
    out_ref,                   # lane-dense slab:       (tile, padded_width)
    *, latent, d_out, pad,
):
    x = x_ref[...]
    eps = eps_ref[...]

    # ----- Encoder MLP: Linear + ReLU -----
    h = jnp.dot(x, we0_ref[...], preferred_element_type=jnp.float32) + be0_ref[...]
    h = jnp.maximum(h, 0.0)

    # ----- Fused means | log_var projection (single MXU pass, 2Z lanes) -----
    mv = jnp.dot(h, wmv_ref[...], preferred_element_type=jnp.float32) + bmv_ref[...]
    means = mv[:, :latent]
    log_var = mv[:, latent:]

    # ----- Reparameterize: z = means + eps * exp(0.5 * log_var) -----
    z = means + eps * jnp.exp(0.5 * log_var)

    # ----- Decoder MLP: Linear + ReLU, then final Linear (out_type=None) -----
    hd = jnp.dot(z, wd0_ref[...], preferred_element_type=jnp.float32) + bd0_ref[...]
    hd = jnp.maximum(hd, 0.0)
    recon = jnp.dot(hd, wd1_ref[...], preferred_element_type=jnp.float32) + bd1_ref[...]

    # ----- Single lane-dense output slab: recon | means | log_var | z | 0-pad -----
    pieces = [recon, means, log_var, z]
    if pad > 0:
        pieces.append(jnp.zeros((recon.shape[0], pad), jnp.float32))
    out_ref[...] = jnp.concatenate(pieces, axis=-1)


def _pick_batch_tile(B):
    if B <= 512:
        return B
    for t in (512, 384, 256, 128):
        if B % t == 0:
            return t
    return B  # fall back to a single big step


def vae_forward_pallas(x, eps, params, *, batch_tile=None):
    """Full VAE forward pass in one Pallas kernel (single lane-dense output)."""
    B, D_in = x.shape
    (we0, be0, wm, bm, wv, bv, wd0, bd0, wd1, bd1) = params
    H = we0.shape[1]
    Z = wm.shape[1]
    D_out = wd1.shape[1]

    if batch_tile is None:
        batch_tile = _pick_batch_tile(B)
    assert B % batch_tile == 0

    # Fuse means/log_var projections into one (H, 2Z) weight / (1, 2Z) bias.
    wmv = jnp.concatenate([wm, wv], axis=1)
    bmv = jnp.concatenate([bm, bv], axis=1)

    slab_w = D_out + 3 * Z
    padded_w = ((slab_w + 127) // 128) * 128   # lane-dense (multiple of 128)
    pad = padded_w - slab_w

    def batch_spec(feat):
        return pl.BlockSpec((batch_tile, feat), lambda i: (i, 0))

    def full_spec(shape):
        return pl.BlockSpec(shape, lambda i: (0, 0))

    kernel = functools.partial(_vae_kernel, latent=Z, d_out=D_out, pad=pad)

    grid_spec = pltpu.PrefetchScalarGridSpec(
        num_scalar_prefetch=0,
        grid=(B // batch_tile,),
        in_specs=[
            batch_spec(D_in),            # x
            batch_spec(Z),               # eps
            full_spec(we0.shape), full_spec(be0.shape),
            full_spec(wmv.shape), full_spec(bmv.shape),
            full_spec(wd0.shape), full_spec(bd0.shape),
            full_spec(wd1.shape), full_spec(bd1.shape),
        ],
        out_specs=pl.BlockSpec((batch_tile, padded_w), lambda i: (i, 0)),
    )

    slab = pl.pallas_call(
        kernel,
        out_shape=jax.ShapeDtypeStruct((B, padded_w), jnp.float32),
        grid_spec=grid_spec,
        compiler_params=pltpu.CompilerParams(
            dimension_semantics=("parallel",)),
    )(x, eps, we0, be0, wmv, bmv, wd0, bd0, wd1, bd1)

    # Slice the slab apart on the XLA side (cheap, lane-dense writeback done).
    recon = slab[:, :D_out]
    means = slab[:, D_out:D_out + Z]
    log_var = slab[:, D_out + Z:D_out + 2 * Z]
    z = slab[:, D_out + 2 * Z:D_out + 3 * Z]
    return recon, means, log_var, z


def init_params(key, d_in, hidden, latent, dec_hidden, d_out):
    """Deterministic parameter init (weights stored as (in, out))."""
    keys = jax.random.split(key, 10)

    def lin(kw, kb, fan_in, fan_out):
        bound = 1.0 / jnp.sqrt(fan_in)
        w = jax.random.uniform(kw, (fan_in, fan_out), jnp.float32, -bound, bound)
        b = jax.random.uniform(kb, (1, fan_out), jnp.float32, -bound, bound)
        return w, b

    we0, be0 = lin(keys[0], keys[1], d_in, hidden)        # encoder L0
    wm, bm = lin(keys[2], keys[3], hidden, latent)        # linear_means
    wv, bv = lin(keys[4], keys[5], hidden, latent)        # linear_log_var
    wd0, bd0 = lin(keys[6], keys[7], latent, dec_hidden)  # decoder L0
    wd1, bd1 = lin(keys[8], keys[9], dec_hidden, d_out)   # decoder L1 (final)
    return (we0, be0, wm, bm, wv, bv, wd0, bd0, wd1, bd1)


def vae_forward_ref(x, eps, params):
    """Pure-JAX reference of the PyTorch forward, for verification."""
    (we0, be0, wm, bm, wv, bv, wd0, bd0, wd1, bd1) = params
    h = jnp.maximum(x @ we0 + be0, 0.0)
    means = h @ wm + bm
    log_var = h @ wv + bv
    z = means + eps * jnp.exp(0.5 * log_var)
    hd = jnp.maximum(z @ wd0 + bd0, 0.0)
    recon = hd @ wd1 + bd1
    return recon, means, log_var, z


if __name__ == "__main__":
    # VAE(encoder_layer_sizes=[32, 64], latent_size=16,
    #     decoder_layer_sizes=[64, 32], conditional=False)
    B = 16          # batch
    D_IN = 32       # encoder_layer_sizes[0]
    HID = 64        # encoder_layer_sizes[1] == decoder hidden
    LAT = 16        # latent_size
    D_OUT = 32      # decoder_layer_sizes[-1]

    root = jax.random.PRNGKey(0)
    k_x, k_eps, k_params = jax.random.split(root, 3)

    x = jax.random.normal(k_x, (B, D_IN), jnp.float32)
    # torch.randn_like(std) in reparameterize -> sampled here and fed in.
    # TODO(synk): in-kernel pltpu.prng_* sampling would avoid this input, but
    # matching the reference requires the externally supplied eps.
    eps = jax.random.normal(k_eps, (B, LAT), jnp.float32)
    params = init_params(k_params, D_IN, HID, LAT, HID, D_OUT)

    recon, means, log_var, z = jax.block_until_ready(
        vae_forward_pallas(x, eps, params))

    r_recon, r_means, r_logvar, r_z = vae_forward_ref(x, eps, params)
    assert jnp.allclose(recon, r_recon, atol=1e-5, rtol=1e-5)
    assert jnp.allclose(means, r_means, atol=1e-5, rtol=1e-5)
    assert jnp.allclose(log_var, r_logvar, atol=1e-5, rtol=1e-5)
    assert jnp.allclose(z, r_z, atol=1e-5, rtol=1e-5)

    print("KERNEL_OK")
</pallas_src>

<mosaic_0001>
module attributes {stable_mosaic.version = 11 : i64} {
  func.func @_vae_kernel(%arg0: i32, %arg1: memref<16x32xf32, #tpu.memory_space<vmem>>, %arg2: memref<16x16xf32, #tpu.memory_space<vmem>>, %arg3: memref<32x64xf32, #tpu.memory_space<vmem>>, %arg4: memref<1x64xf32, #tpu.memory_space<vmem>>, %arg5: memref<64x32xf32, #tpu.memory_space<vmem>>, %arg6: memref<1x32xf32, #tpu.memory_space<vmem>>, %arg7: memref<16x64xf32, #tpu.memory_space<vmem>>, %arg8: memref<1x64xf32, #tpu.memory_space<vmem>>, %arg9: memref<64x32xf32, #tpu.memory_space<vmem>>, %arg10: memref<1x32xf32, #tpu.memory_space<vmem>>, %arg11: memref<16x128xf32, #tpu.memory_space<vmem>>) attributes {dimension_semantics = [#tpu.dimension_semantics<parallel>], iteration_bounds = array<i64: 1>, scalar_prefetch = 0 : i64, scratch_operands = 0 : i64, tpu.core_type = #tpu.core_type<tc>, window_params = [{transform_indices = @transform_0, window_bounds = array<i64: 16, 32>}, {transform_indices = @transform_1, window_bounds = array<i64: 16, 16>}, {pipeline_mode = #tpu.pipeline_mode<synchronous>, transform_indices = @transform_2, window_bounds = array<i64: 32, 64>}, {pipeline_mode = #tpu.pipeline_mode<synchronous>, transform_indices = @transform_3, window_bounds = array<i64: 1, 64>}, {pipeline_mode = #tpu.pipeline_mode<synchronous>, transform_indices = @transform_4, window_bounds = array<i64: 64, 32>}, {pipeline_mode = #tpu.pipeline_mode<synchronous>, transform_indices = @transform_5, window_bounds = array<i64: 1, 32>}, {pipeline_mode = #tpu.pipeline_mode<synchronous>, transform_indices = @transform_6, window_bounds = array<i64: 16, 64>}, {pipeline_mode = #tpu.pipeline_mode<synchronous>, transform_indices = @transform_7, window_bounds = array<i64: 1, 64>}, {pipeline_mode = #tpu.pipeline_mode<synchronous>, transform_indices = @transform_8, window_bounds = array<i64: 64, 32>}, {pipeline_mode = #tpu.pipeline_mode<synchronous>, transform_indices = @transform_9, window_bounds = array<i64: 1, 32>}, {transform_indices = @transform_10, window_bounds = array<i64: 16, 128>}]} {
    %c0 = arith.constant 0 : index
    %c0_0 = arith.constant 0 : index
    %0 = vector.load %arg1[%c0, %c0_0] : memref<16x32xf32, #tpu.memory_space<vmem>>, vector<16x32xf32>
    %c0_1 = arith.constant 0 : index
    %c0_2 = arith.constant 0 : index
    %1 = vector.load %arg2[%c0_1, %c0_2] : memref<16x16xf32, #tpu.memory_space<vmem>>, vector<16x16xf32>
    %c0_3 = arith.constant 0 : index
    %c0_4 = arith.constant 0 : index
    %2 = vector.load %arg3[%c0_3, %c0_4] : memref<32x64xf32, #tpu.memory_space<vmem>>, vector<32x64xf32>
    %cst = arith.constant dense<0.000000e+00> : vector<16x64xf32>
    %3 = tpu.matmul %0, %2, %cst {dimension_numbers = #tpu.dot_dimension_numbers<[1], [0], [0], [1], [0, 0, 1, 1], [], []>} : vector<16x32xf32>, vector<32x64xf32>, vector<16x64xf32> -> vector<16x64xf32>
    %c0_5 = arith.constant 0 : index
    %c0_6 = arith.constant 0 : index
    %4 = vector.load %arg4[%c0_5, %c0_6] : memref<1x64xf32, #tpu.memory_space<vmem>>, vector<1x64xf32>
    %5 = vector.broadcast %4 : vector<1x64xf32> to vector<16x64xf32>
    %6 = arith.addf %3, %5 : vector<16x64xf32>
    %cst_7 = arith.constant 0.000000e+00 : f32
    %7 = vector.broadcast %cst_7 : f32 to vector<16x64xf32>
    %8 = arith.maximumf %6, %7 : vector<16x64xf32>
    %c0_8 = arith.constant 0 : index
    %c0_9 = arith.constant 0 : index
    %9 = vector.load %arg5[%c0_8, %c0_9] : memref<64x32xf32, #tpu.memory_space<vmem>>, vector<64x32xf32>
    %cst_10 = arith.constant dense<0.000000e+00> : vector<16x32xf32>
    %10 = tpu.matmul %8, %9, %cst_10 {dimension_numbers = #tpu.dot_dimension_numbers<[1], [0], [0], [1], [0, 0, 1, 1], [], []>} : vector<16x64xf32>, vector<64x32xf32>, vector<16x32xf32> -> vector<16x32xf32>
    %c0_11 = arith.constant 0 : index
    %c0_12 = arith.constant 0 : index
    %11 = vector.load %arg6[%c0_11, %c0_12] : memref<1x32xf32, #tpu.memory_space<vmem>>, vector<1x32xf32>
    %12 = vector.broadcast %11 : vector<1x32xf32> to vector<16x32xf32>
    %13 = arith.addf %10, %12 : vector<16x32xf32>
    %14 = vector.extract_strided_slice %13 {offsets = [0, 0], sizes = [16, 16], strides = [1, 1]} : vector<16x32xf32> to vector<16x16xf32>
    %15 = vector.extract_strided_slice %13 {offsets = [0, 16], sizes = [16, 16], strides = [1, 1]} : vector<16x32xf32> to vector<16x16xf32>
    %cst_13 = arith.constant 5.000000e-01 : f32
    %16 = vector.broadcast %cst_13 : f32 to vector<16x16xf32>
    %17 = arith.mulf %16, %15 : vector<16x16xf32>
    %18 = math.exp %17 : vector<16x16xf32>
    %19 = arith.mulf %1, %18 : vector<16x16xf32>
    %20 = arith.addf %14, %19 : vector<16x16xf32>
    %c0_14 = arith.constant 0 : index
    %c0_15 = arith.constant 0 : index
    %21 = vector.load %arg7[%c0_14, %c0_15] : memref<16x64xf32, #tpu.memory_space<vmem>>, vector<16x64xf32>
    %cst_16 = arith.constant dense<0.000000e+00> : vector<16x64xf32>
    %22 = tpu.matmul %20, %21, %cst_16 {dimension_numbers = #tpu.dot_dimension_numbers<[1], [0], [0], [1], [0, 0, 1, 1], [], []>} : vector<16x16xf32>, vector<16x64xf32>, vector<16x64xf32> -> vector<16x64xf32>
    %c0_17 = arith.constant 0 : index
    %c0_18 = arith.constant 0 : index
    %23 = vector.load %arg8[%c0_17, %c0_18] : memref<1x64xf32, #tpu.memory_space<vmem>>, vector<1x64xf32>
    %24 = vector.broadcast %23 : vector<1x64xf32> to vector<16x64xf32>
    %25 = arith.addf %22, %24 : vector<16x64xf32>
    %cst_19 = arith.constant 0.000000e+00 : f32
    %26 = vector.broadcast %cst_19 : f32 to vector<16x64xf32>
    %27 = arith.maximumf %25, %26 : vector<16x64xf32>
    %c0_20 = arith.constant 0 : index
    %c0_21 = arith.constant 0 : index
    %28 = vector.load %arg9[%c0_20, %c0_21] : memref<64x32xf32, #tpu.memory_space<vmem>>, vector<64x32xf32>
    %cst_22 = arith.constant dense<0.000000e+00> : vector<16x32xf32>
    %29 = tpu.matmul %27, %28, %cst_22 {dimension_numbers = #tpu.dot_dimension_numbers<[1], [0], [0], [1], [0, 0, 1, 1], [], []>} : vector<16x64xf32>, vector<64x32xf32>, vector<16x32xf32> -> vector<16x32xf32>
    %c0_23 = arith.constant 0 : index
    %c0_24 = arith.constant 0 : index
    %30 = vector.load %arg10[%c0_23, %c0_24] : memref<1x32xf32, #tpu.memory_space<vmem>>, vector<1x32xf32>
    %31 = vector.broadcast %30 : vector<1x32xf32> to vector<16x32xf32>
    %32 = arith.addf %29, %31 : vector<16x32xf32>
    %cst_25 = arith.constant 0.000000e+00 : f32
    %33 = vector.broadcast %cst_25 : f32 to vector<16x48xf32>
    %34 = tpu.concatenate %32, %14, %15, %20, %33 in 1 : vector<16x32xf32>, vector<16x16xf32>, vector<16x16xf32>, vector<16x16xf32>, vector<16x48xf32> -> vector<16x128xf32>
    %c0_26 = arith.constant 0 : index
    %c0_27 = arith.constant 0 : index
    %35 = vector.load %arg11[%c0_26, %c0_27] : memref<16x128xf32, #tpu.memory_space<vmem>>, vector<16x128xf32>
    tpu.vector_store %arg11[%c0_26, %c0_27], %34 {strides = array<i32>} : memref<16x128xf32, #tpu.memory_space<vmem>>, vector<16x128xf32>,
    return
  }
  func.func @transform_0(%arg0: i32) -> (i32, i32) {
    %c0_i32 = arith.constant 0 : i32
    %c0_i32_0 = arith.constant 0 : i32
    return %arg0, %c0_i32 : i32, i32
  }
  func.func @transform_1(%arg0: i32) -> (i32, i32) {
    %c0_i32 = arith.constant 0 : i32
    %c0_i32_0 = arith.constant 0 : i32
    return %arg0, %c0_i32 : i32, i32
  }
  func.func @transform_2(%arg0: i32) -> (i32, i32) {
    %c0_i32 = arith.constant 0 : i32
    %c0_i32_0 = arith.constant 0 : i32
    %c0_i32_1 = arith.constant 0 : i32
    return %c0_i32, %c0_i32_0 : i32, i32
  }
  func.func @transform_3(%arg0: i32) -> (i32, i32) {
    %c0_i32 = arith.constant 0 : i32
    %c0_i32_0 = arith.constant 0 : i32
    %c0_i32_1 = arith.constant 0 : i32
    return %c0_i32, %c0_i32_0 : i32, i32
  }
  func.func @transform_4(%arg0: i32) -> (i32, i32) {
    %c0_i32 = arith.constant 0 : i32
    %c0_i32_0 = arith.constant 0 : i32
    %c0_i32_1 = arith.constant 0 : i32
    return %c0_i32, %c0_i32_0 : i32, i32
  }
  func.func @transform_5(%arg0: i32) -> (i32, i32) {
    %c0_i32 = arith.constant 0 : i32
    %c0_i32_0 = arith.constant 0 : i32
    %c0_i32_1 = arith.constant 0 : i32
    return %c0_i32, %c0_i32_0 : i32, i32
  }
  func.func @transform_6(%arg0: i32) -> (i32, i32) {
    %c0_i32 = arith.constant 0 : i32
    %c0_i32_0 = arith.constant 0 : i32
    %c0_i32_1 = arith.constant 0 : i32
    return %c0_i32, %c0_i32_0 : i32, i32
  }
  func.func @transform_7(%arg0: i32) -> (i32, i32) {
    %c0_i32 = arith.constant 0 : i32
    %c0_i32_0 = arith.constant 0 : i32
    %c0_i32_1 = arith.constant 0 : i32
    return %c0_i32, %c0_i32_0 : i32, i32
  }
  func.func @transform_8(%arg0: i32) -> (i32, i32) {
    %c0_i32 = arith.constant 0 : i32
    %c0_i32_0 = arith.constant 0 : i32
    %c0_i32_1 = arith.constant 0 : i32
    return %c0_i32, %c0_i32_0 : i32, i32
  }
  func.func @transform_9(%arg0: i32) -> (i32, i32) {
    %c0_i32 = arith.constant 0 : i32
    %c0_i32_0 = arith.constant 0 : i32
    %c0_i32_1 = arith.constant 0 : i32
    return %c0_i32, %c0_i32_0 : i32, i32
  }
  func.func @transform_10(%arg0: i32) -> (i32, i32) {
    %c0_i32 = arith.constant 0 : i32
    %c0_i32_0 = arith.constant 0 : i32
    return %arg0, %c0_i32 : i32, i32
  }
}

</mosaic_0001>

<llo_original>
// kernel: tpu_custom_call.1
$region0: #{tpu_custom_call.1}
  #allocation0 [shape = 'u32[]', space=smem, size = 0x4, offset = 0x4, fixed_abs, tag = 'smem constant byte address 0x4 - core index']
  #allocation1 [shape = 'u32[72,128]{1,0:T(1,128)}', space=vmem, size = 0x9000, scoped, tag = 'internal scratch']
  %s0 = inlined_call_operand.vmem [shape: f32[16,32], index: 0, kind: input, shape index: {}]
  %s1 = inlined_call_operand.vmem [shape: f32[16,16], index: 1, kind: input, shape index: {}]
  %s2 = inlined_call_operand.vmem [shape: f32[32,64], index: 2, kind: input, shape index: {}]
  %s3 = inlined_call_operand.vmem [shape: f32[1,64], index: 3, kind: input, shape index: {}]
  %s4 = inlined_call_operand.vmem [shape: f32[64,32], index: 4, kind: input, shape index: {}]
  %s5 = inlined_call_operand.vmem [shape: f32[1,32], index: 5, kind: input, shape index: {}]
  %s6 = inlined_call_operand.vmem [shape: f32[16,64], index: 6, kind: input, shape index: {}]
  %s7 = inlined_call_operand.vmem [shape: f32[1,64], index: 7, kind: input, shape index: {}]
  %s8 = inlined_call_operand.vmem [shape: f32[64,32], index: 8, kind: input, shape index: {}]
  %s9 = inlined_call_operand.vmem [shape: f32[1,32], index: 9, kind: input, shape index: {}]
  %s10 = inlined_call_operand.hbm [shape: f32[16,128], index: 10, kind: output, shape index: {}]
  %s11 = sld [smem:[#allocation0]]
  $region50: #{tpu_custom_call.1} parent=0
    _
  %s13 = ssub.s32 1, %s11
  %s14 = scalar_select 0, %s13, %s11
  $region1: #{tpu_custom_call.1} parent=0
    #allocation2 [shape = 'u8[8192]{0}', space=vmem, size = 0x2000, scoped, tag = 'output window, operand 0, single buffered']
    #allocation3 [shape = 's32[1]{0}', space=sflag, size = 0x4, scoped, tag = 'scoped memory for tpu_custom_call.1']
    %15 = vsyncpa [#allocation3], 0
    // Predicated region
    $region2: #{tpu_custom_call.1} parent=1 // pred_check
      _
    $region3: #{tpu_custom_call.1} parent=1 // pred_check_branch
      %17 = sbr.rel (0) target = $region5
    $region4: #{tpu_custom_call.1} parent=1 // pred_region
      _
    $region5: #{tpu_custom_call.1} parent=1 // pred_fallthru
      _
    // Predicated region
    $region6: #{tpu_custom_call.1} parent=1 // pred_check
      _
    $region7: #{tpu_custom_call.1} parent=1 // pred_check_branch
      %19 = sbr.rel (0) target = $region9
    $region8: #{tpu_custom_call.1} parent=1 // pred_region
      _
    $region9: #{tpu_custom_call.1} parent=1 // pred_fallthru
      _
    // Predicated region
    $region10: #{tpu_custom_call.1} parent=1 // pred_check
      _
    $region11: #{tpu_custom_call.1} parent=1 // pred_check_branch
      %21 = sbr.rel (0) target = $region13
    $region12: #{tpu_custom_call.1} parent=1 // pred_region
      _
    $region13: #{tpu_custom_call.1} parent=1 // pred_fallthru
      _
    // Predicated region
    $region14: #{tpu_custom_call.1} parent=1 // pred_check
      _
    $region15: #{tpu_custom_call.1} parent=1 // pred_check_branch
      %23 = sbr.rel (0) target = $region17
    $region16: #{tpu_custom_call.1} parent=1 // pred_region
      _
    $region17: #{tpu_custom_call.1} parent=1 // pred_fallthru
      _
    // Predicated region
    $region18: #{tpu_custom_call.1} parent=1 // pred_check
      _
    $region19: #{tpu_custom_call.1} parent=1 // pred_check_branch
      %25 = sbr.rel (0) target = $region21
    $region20: #{tpu_custom_call.1} parent=1 // pred_region
      _
    $region21: #{tpu_custom_call.1} parent=1 // pred_fallthru
      _
    // Predicated region
    $region22: #{tpu_custom_call.1} parent=1 // pred_check
      _
    $region23: #{tpu_custom_call.1} parent=1 // pred_check_branch
      %27 = sbr.rel (0) target = $region25
    $region24: #{tpu_custom_call.1} parent=1 // pred_region
      _
    $region25: #{tpu_custom_call.1} parent=1 // pred_fallthru
      _
    // Predicated region
    $region26: #{tpu_custom_call.1} parent=1 // pred_check
      _
    $region27: #{tpu_custom_call.1} parent=1 // pred_check_branch
      %29 = sbr.rel (0) target = $region29
    $region28: #{tpu_custom_call.1} parent=1 // pred_region
      _
    $region29: #{tpu_custom_call.1} parent=1 // pred_fallthru
      _
    // Predicated region
    $region30: #{tpu_custom_call.1} parent=1 // pred_check
      _
    $region31: #{tpu_custom_call.1} parent=1 // pred_check_branch
      %31 = sbr.rel (0) target = $region33
    $region32: #{tpu_custom_call.1} parent=1 // pred_region
      _
    $region33: #{tpu_custom_call.1} parent=1 // pred_fallthru
      _
    // Predicated region
    $region34: #{tpu_custom_call.1} parent=1 // pred_check
      _
    $region35: #{tpu_custom_call.1} parent=1 // pred_check_branch
      %33 = sbr.rel (0) target = $region37
    $region36: #{tpu_custom_call.1} parent=1 // pred_region
      _
    $region37: #{tpu_custom_call.1} parent=1 // pred_fallthru
      _
    // Predicated region
    $region38: #{tpu_custom_call.1} parent=1 // pred_check
      _
    $region39: #{tpu_custom_call.1} parent=1 // pred_check_branch
      %35 = sbr.rel (0) target = $region41
    $region40: #{tpu_custom_call.1} parent=1 // pred_region
      _
    $region41: #{tpu_custom_call.1} parent=1 // pred_fallthru
      _
    %v36 = vld [vmem:[%s0] sm:$0xff]
    %v37 = vld [vmem:[%s0 + $0x8] sm:$0xff]
    %v38 = vld [vmem:[%s1] sm:$0xff]
    %v39 = vld [vmem:[%s1 + $0x8] sm:$0xff]
    %v40 = vld [vmem:[%s2] sm:$0xff]
    %v41 = vld [vmem:[%s2 + $0x8] sm:$0xff]
    %v42 = vld [vmem:[%s2 + $0x10] sm:$0xff]
    %v43 = vld [vmem:[%s2 + $0x18] sm:$0xff]
    %v44 = vld [vmem:[%s3] sm:$0x1]
    %v46 = vperm.slane %v44, 0
    %vm48 = vcmask 261120
    %v50 = vsel %vm48, %v36, 0
    %v53 = vsel %vm48, %v37, 0
    %55 = vmatpush.msra.mxu0 0.0
    %56 = vmatpush.msra.mxu0 0.0
    %57 = vmatpush.msra.mxu0 0.0
    %58 = vmatpush.msra.mxu0 0.0
    %59 = vmatpush.msra.mxu0 0.0
    %60 = vmatpush.msra.mxu0 0.0
    %61 = vmatpush.msra.mxu0 0.0
    %62 = vmatpush.msra.mxu0 0.0
    %63 = vmatpush.msra.mxu0 0.0
    %64 = vmatpush.msra.mxu0 0.0
    %65 = vmatpush.msra.mxu0 0.0
    %66 = vmatpush.msra.mxu0 0.0
    %67 = vmatpush.msra.mxu0 %v43
    %68 = vmatpush.msra.mxu0 %v42
    %69 = vmatpush.msra.mxu0 %v41
    %70 = vmatpush.msra.mxu0 %v40
    %71 = vmatmul.f32.gmra.mxu0 %v50
    %v72 = vpop.f32.mrf.mxu0
    %v73 = vadd.f32 %v46, %v72
    %74 = vmatmul.f32.gmra.mxu0 %v53
    %v75 = vpop.f32.mrf.mxu0
    %v76 = vadd.f32 %v46, %v75
    %77 = vdwg.mxu0
    %v78 = vmax.f32 %v73, 0.0
    %v79 = vmax.f32 %v76, 0.0
    %v80 = vld [vmem:[%s4] sm:$0xff]
    %v81 = vld [vmem:[%s4 + $0x8] sm:$0xff]
    %v82 = vld [vmem:[%s4 + $0x10] sm:$0xff]
    %v83 = vld [vmem:[%s4 + $0x18] sm:$0xff]
    %v84 = vld [vmem:[%s4 + $0x20] sm:$0xff]
    %v85 = vld [vmem:[%s4 + $0x28] sm:$0xff]
    %v86 = vld [vmem:[%s4 + $0x30] sm:$0xff]
    %v87 = vld [vmem:[%s4 + $0x38] sm:$0xff]
    %v88 = vld [vmem:[%s5] sm:$0x1]
    %v90 = vperm.slane %v88, 0
    %vm92 = vcmask 523264
    %v94 = vsel %vm92, %v78, 0
    %v97 = vsel %vm92, %v79, 0
    %99 = vmatpush.msra.mxu0 0.0
    %100 = vmatpush.msra.mxu0 0.0
    %101 = vmatpush.msra.mxu0 0.0
    %102 = vmatpush.msra.mxu0 0.0
    %103 = vmatpush.msra.mxu0 0.0
    %104 = vmatpush.msra.mxu0 0.0
    %105 = vmatpush.msra.mxu0 0.0
    %106 = vmatpush.msra.mxu0 0.0
    %107 = vmatpush.msra.mxu0 %v87
    %108 = vmatpush.msra.mxu0 %v86
    %109 = vmatpush.msra.mxu0 %v85
    %110 = vmatpush.msra.mxu0 %v84
    %111 = vmatpush.msra.mxu0 %v83
    %112 = vmatpush.msra.mxu0 %v82
    %113 = vmatpush.msra.mxu0 %v81
    %114 = vmatpush.msra.mxu0 %v80
    %115 = vmatmul.f32.gmra.mxu0 %v94
    %v116 = vpop.f32.mrf.mxu0
    %v117 = vadd.f32 %v90, %v116
    %118 = vmatmul.f32.gmra.mxu0 %v97
    %v119 = vpop.f32.mrf.mxu0
    %v120 = vadd.f32 %v90, %v119
    %121 = vdwg.mxu0
    %v122 = vmul.f32 %v117, 0.5
    %v123 = vmul.f32 %v120, 0.5
    %v124 = vmul.f32 %v122, 1.442695
    %v125 = vpow.pop %v124
    %v126 = vmul.f32 %v123, 1.442695
    %v127 = vpow.pop %v126
    %130 = vrot.lane.b32.xlu0 %v125, 112
    %v131 = vpop.permute.xlu0 %130
    %132 = vrot.lane.b32.xlu0 %v127, 112
    %v133 = vpop.permute.xlu0 %132
    %v136 = vmul.f32 %v38, %v131
    %v137 = vmul.f32 %v39, %v133
    %v138 = vadd.f32 %v117, %v136
    %v139 = vadd.f32 %v120, %v137
    %v140 = vld [vmem:[%s6] sm:$0xff]
    %v141 = vld [vmem:[%s6 + $0x8] sm:$0xff]
    %v142 = vld [vmem:[%s7] sm:$0x1]
    %v144 = vperm.slane %v142, 0
    %vm146 = vcmask 130048
    %v148 = vsel %vm146, %v138, 0
    %v151 = vsel %vm146, %v139, 0
    %153 = vmatpush.msra.mxu0 0.0
    %154 = vmatpush.msra.mxu0 0.0
    %155 = vmatpush.msra.mxu0 0.0
    %156 = vmatpush.msra.mxu0 0.0
    %157 = vmatpush.msra.mxu0 0.0
    %158 = vmatpush.msra.mxu0 0.0
    %159 = vmatpush.msra.mxu0 0.0
    %160 = vmatpush.msra.mxu0 0.0
    %161 = vmatpush.msra.mxu0 0.0
    %162 = vmatpush.msra.mxu0 0.0
    %163 = vmatpush.msra.mxu0 0.0
    %164 = vmatpush.msra.mxu0 0.0
    %165 = vmatpush.msra.mxu0 0.0
    %166 = vmatpush.msra.mxu0 0.0
    %167 = vmatpush.msra.mxu0 %v141
    %168 = vmatpush.msra.mxu0 %v140
    %169 = vmatmul.f32.gmra.mxu0 %v148
    %v170 = vpop.f32.mrf.mxu0
    %v171 = vadd.f32 %v144, %v170
    %172 = vmatmul.f32.gmra.mxu0 %v151
    %v173 = vpop.f32.mrf.mxu0
    %v174 = vadd.f32 %v144, %v173
    %175 = vdwg.mxu0
    %v176 = vmax.f32 %v171, 0.0
    %v177 = vmax.f32 %v174, 0.0
    %v178 = vld [vmem:[%s8] sm:$0xff]
    %v179 = vld [vmem:[%s8 + $0x8] sm:$0xff]
    %v180 = vld [vmem:[%s8 + $0x10] sm:$0xff]
    %v181 = vld [vmem:[%s8 + $0x18] sm:$0xff]
    %v182 = vld [vmem:[%s8 + $0x20] sm:$0xff]
    %v183 = vld [vmem:[%s8 + $0x28] sm:$0xff]
    %v184 = vld [vmem:[%s8 + $0x30] sm:$0xff]
    %v185 = vld [vmem:[%s8 + $0x38] sm:$0xff]
    %v186 = vld [vmem:[%s9] sm:$0x1]
    %v188 = vperm.slane %v186, 0
    %v191 = vsel %vm92, %v176, 0
    %v194 = vsel %vm92, %v177, 0
    %196 = vmatpush.msra.mxu0 0.0
    %197 = vmatpush.msra.mxu0 0.0
    %198 = vmatpush.msra.mxu0 0.0
    %199 = vmatpush.msra.mxu0 0.0
    %200 = vmatpush.msra.mxu0 0.0
    %201 = vmatpush.msra.mxu0 0.0
    %202 = vmatpush.msra.mxu0 0.0
    %203 = vmatpush.msra.mxu0 0.0
    %204 = vmatpush.msra.mxu0 %v185
    %205 = vmatpush.msra.mxu0 %v184
    %206 = vmatpush.msra.mxu0 %v183
    %207 = vmatpush.msra.mxu0 %v182
    %208 = vmatpush.msra.mxu0 %v181
    %209 = vmatpush.msra.mxu0 %v180
    %210 = vmatpush.msra.mxu0 %v179
    %211 = vmatpush.msra.mxu0 %v178
    %212 = vmatmul.f32.gmra.mxu0 %v191
    %v213 = vpop.f32.mrf.mxu0
    %v214 = vadd.f32 %v188, %v213
    %215 = vmatmul.f32.gmra.mxu0 %v194
    %v216 = vpop.f32.mrf.mxu0
    %v217 = vadd.f32 %v188, %v216
    %218 = vdwg.mxu0
    %221 = vrot.lane.b32.xlu0 %v117, 32
    %v222 = vpop.permute.xlu0 %221
    %223 = vrot.lane.b32.xlu0 %v120, 32
    %v224 = vpop.permute.xlu0 %223
    %227 = vrot.lane.b32.xlu0 %v138, 64
    %v228 = vpop.permute.xlu0 %227
    %229 = vrot.lane.b32.xlu0 %v139, 64
    %v230 = vpop.permute.xlu0 %229
    %v233 = vsel %vm48, %v214, %v222
    %v234 = vsel %vm48, %v217, %v224
    %vm235 = vcmask 392192
    %v236 = vsel %vm235, %v233, %v222
    %v237 = vsel %vm235, %v234, %v224
    %v238 = vsel %vm92, %v236, %v228
    %v239 = vsel %vm92, %v237, %v230
    %vm240 = vcmask 654336
    %v241 = vsel %vm240, %v238, 0.0
    %v242 = vsel %vm240, %v239, 0.0
    %243 = vst [vmem:[#allocation2] sm:$0xff] %v241
    %244 = vst [vmem:[#allocation2 + $0x8] sm:$0xff] %v242
    // Predicated region
    $region42: #{tpu_custom_call.1} parent=1 // pred_check
      _
    $region43: #{tpu_custom_call.1} parent=1 // pred_check_branch
      %246 = sbr.rel (0) target = $region45
    $region44: #{tpu_custom_call.1} parent=1 // pred_region
      %248 = vsyncadd [#allocation3], 0
      %s249 = sshll.u32 [#allocation2], 4
      %s250 = int_to_ptr.vmem [resolvable:$true] %s249
      %s251 = sshll.u32 %s10, 4
      %s252 = int_to_ptr.hbm [resolvable:$true] %s251
      %257 = dma.vmem_to_hbm [thread:$0]  %s250, 256, %s252, [#allocation3], 128, 128, 8
    $region45: #{tpu_custom_call.1} parent=1 // pred_fallthru
      _
    // Predicated region
    $region46: #{tpu_custom_call.1} parent=1 // pred_check
      _
    $region47: #{tpu_custom_call.1} parent=1 // pred_check_branch
      %259 = sbr.rel (0) target = $region49
    $region48: #{tpu_custom_call.1} parent=1 // pred_region
      %261 = dma.done [#allocation3], 256
    $region49: #{tpu_custom_call.1} parent=1 // pred_fallthru
      _
    %262 = vsyncpa [#allocation3], 1

</llo_original>
